<compile_context>
chip_gen: v7x
topology: tpu7x:2x2x1
jax: 0.10.0
libtpu: 0.0.40
codegen_flags: <defaults>
</compile_context>

<pallas_src>
import functools

import jax
import jax.numpy as jnp
from jax.experimental import pallas as pl
from jax.experimental.pallas import tpu as pltpu


def _dino_loss_kernel(student_ref, teacher_ref, center_ref,
                      loss_part_ref, csum_part_ref,
                      loss_acc, csum_acc, *,
                      num_chunks, feat, inv_student_temp, inv_teacher_temp,
                      reciprocal_approx):
    i = pl.program_id(1)

    @pl.when(i == 0)
    def _init():
        loss_acc[...] = jnp.zeros_like(loss_acc)
        csum_acc[...] = jnp.zeros_like(csum_acc)

    # ---- teacher tile: (2, tb, D); cast per tile (inputs stay native in HBM) ----
    t = teacher_ref[...].astype(jnp.float32)
    cen = center_ref[...].astype(jnp.float32)                       # (1, D)

    # Running teacher row-sum for the EMA center (no second HBM pass needed).
    csum_acc[...] += jnp.sum(jnp.sum(t, axis=0, keepdims=True),
                             axis=1, keepdims=True)                 # (1, 1, D)

    # ---- teacher softmax (centered, temperature-scaled) ----
    tl = (t - cen[None, :, :]) * inv_teacher_temp                   # (2, tb, D)
    t_max = jnp.max(tl, axis=-1, keepdims=True)
    t_exp = jnp.exp(tl - t_max)
    t_den = jnp.sum(t_exp, axis=-1, keepdims=True)
    t_probs = t_exp * pl.reciprocal(t_den, approx=reciprocal_approx)

    # ---- student tile: (num_chunks, tb, D) ----
    s = student_ref[...].astype(jnp.float32) * inv_student_temp

    # Per-chunk log-softmax, accumulating S = sum_v logp_v; keep logp_0/logp_1
    # (the chunks that coincide with the two teacher views).
    logp_sum = None
    logp_first_two = []
    for v in range(num_chunks):
        sv = s[v]                                                   # (tb, D)
        sv = sv - jnp.max(sv, axis=-1, keepdims=True)
        lse = jnp.log(jnp.sum(jnp.exp(sv), axis=-1, keepdims=True))
        logp_v = sv - lse
        logp_sum = logp_v if logp_sum is None else logp_sum + logp_v
        if v < 2:
            logp_first_two.append(logp_v)

    # Factored pair loop:  sum_{v != iq} -q.logp_v == q.(logp_iq - S)
    contrib = jnp.zeros((1, 1), jnp.float32)
    for iq in range(2):
        contrib = contrib + jnp.sum(
            t_probs[iq] * (logp_first_two[iq] - logp_sum), keepdims=True)
    loss_acc[...] += contrib

    @pl.when(i == pl.num_programs(1) - 1)
    def _finalize():
        # Lane-broadcast the scalar partial loss into a lane-dense output row.
        loss_part_ref[...] = loss_acc[...] + jnp.zeros((1, 1, feat), jnp.float32)
        csum_part_ref[...] = csum_acc[...]


def _pick_batch_tile(batch, num_chunks, feat, itemsize, budget_bytes=20 << 20):
    """Largest multiple-of-8 tile dividing `batch` that double-buffers within budget."""
    if batch % 8 != 0:
        return batch                      # full-extent block (always legal)
    best = 8
    for t in range(8, min(batch, 1024) + 1, 8):
        if batch % t:
            continue
        dma_bytes = 2 * (num_chunks + 2) * t * feat * itemsize   # double-buffered blocks
        work_bytes = (num_chunks + 8) * t * feat * 4             # f32 live intermediates
        if dma_bytes + work_bytes <= budget_bytes:
            best = t
    return best


def dino_loss(student_logits, teacher_logits, center, *,
              num_local_crops, step,
              student_temp, teacher_temp,
              warmup_teacher_temp=None, warmup_teacher_temp_iters=0,
              center_momentum=0.9, batch_tile=None, num_core_splits=None,
              reciprocal_approx=True):
    """Returns (loss_scalar, updated_center).  `step` must be a static Python int."""
    num_chunks = num_local_crops + 2
    total_rows, feat = student_logits.shape
    assert total_rows % num_chunks == 0
    batch = total_rows // num_chunks
    assert teacher_logits.shape == (2 * batch, feat)
    assert center.shape == (1, feat)

    # Teacher-temperature warmup schedule (static Python, like the module).
    if (warmup_teacher_temp is not None and warmup_teacher_temp_iters > 0
            and step < warmup_teacher_temp_iters):
        warmup_step_size = ((teacher_temp - warmup_teacher_temp)
                            / warmup_teacher_temp_iters)
        t_temp = warmup_teacher_temp + step * warmup_step_size
    else:
        t_temp = teacher_temp

    # Free row-major reshapes: chunk axis leading, batch axis tileable.
    student3 = student_logits.reshape(num_chunks, batch, feat)
    teacher3 = teacher_logits.reshape(2, batch, feat)

    if batch_tile is None:
        batch_tile = _pick_batch_tile(
            batch, num_chunks, feat, jnp.dtype(student_logits.dtype).itemsize)
    assert batch % batch_tile == 0
    n_tiles = batch // batch_tile
    if num_core_splits is None:
        num_core_splits = 2 if (n_tiles % 2 == 0 and n_tiles >= 2) else 1
    assert n_tiles % num_core_splits == 0
    tiles_per_split = n_tiles // num_core_splits

    kernel = functools.partial(
        _dino_loss_kernel,
        num_chunks=num_chunks, feat=feat,
        inv_student_temp=float(1.0 / student_temp),
        inv_teacher_temp=float(1.0 / t_temp),
        reciprocal_approx=reciprocal_approx,
    )

    loss_part, csum_part = pl.pallas_call(
        kernel,
        grid=(num_core_splits, tiles_per_split),
        in_specs=[
            pl.BlockSpec((num_chunks, batch_tile, feat),
                         lambda c, i: (0, c * tiles_per_split + i, 0)),
            pl.BlockSpec((2, batch_tile, feat),
                         lambda c, i: (0, c * tiles_per_split + i, 0)),
            pl.BlockSpec((1, feat), lambda c, i: (0, 0)),
        ],
        out_specs=[
            pl.BlockSpec((1, 1, feat), lambda c, i: (c, 0, 0)),
            pl.BlockSpec((1, 1, feat), lambda c, i: (c, 0, 0)),
        ],
        out_shape=(
            jax.ShapeDtypeStruct((num_core_splits, 1, feat), jnp.float32),
            jax.ShapeDtypeStruct((num_core_splits, 1, feat), jnp.float32),
        ),
        scratch_shapes=[
            pltpu.VMEM((1, 1), jnp.float32),        # running loss sum
            pltpu.VMEM((1, 1, feat), jnp.float32),  # running teacher row-sum
        ],
        compiler_params=pltpu.CompilerParams(
            dimension_semantics=("parallel", "arbitrary"),
            vmem_limit_bytes=48 * 1024 * 1024),
    )(student3, teacher3, center)

    # Tiny cross-core combines in the wrapper (negligible XLA ops).
    n_terms = 2 * (num_chunks - 1)
    loss = jnp.sum(loss_part[:, 0, 0]) / (batch * n_terms)
    batch_center = jnp.sum(csum_part[:, 0, :], axis=0, keepdims=True) / (2 * batch)
    new_center = (center.astype(jnp.float32) * center_momentum
                  + batch_center * (1.0 - center_momentum))
    return loss, new_center


def _reference_loss(student_logits, teacher_logits, center, *,
                    num_local_crops, student_temp, teacher_temp):
    """Pure-JAX reference mirroring the PyTorch forward."""
    num_chunks = num_local_crops + 2
    batch = student_logits.shape[0] // num_chunks
    s = student_logits / student_temp
    s_chunks = [s[v * batch:(v + 1) * batch] for v in range(num_chunks)]
    t_probs = jax.nn.softmax((teacher_logits - center) / teacher_temp, axis=-1)
    t_chunks = [t_probs[i * batch:(i + 1) * batch] for i in range(2)]
    total, n_terms = 0.0, 0
    for iq, q in enumerate(t_chunks):
        for v, sl in enumerate(s_chunks):
            if v == iq:
                continue
            loss = jnp.sum(-q * jax.nn.log_softmax(sl, axis=-1), axis=-1)
            total = total + jnp.mean(loss)
            n_terms += 1
    return total / n_terms


if __name__ == "__main__":
    key = jax.random.PRNGKey(0)
    k_s, k_t = jax.random.split(key)

    # Small but TPU-aligned shapes: B=32, D=128, 2 local crops -> 4 chunks.
    batch, feat, num_local_crops = 32, 128, 2
    num_chunks = num_local_crops + 2

    student_logits = jax.random.normal(k_s, (num_chunks * batch, feat),
                                       dtype=jnp.float32)
    teacher_logits = jax.random.normal(k_t, (2 * batch, feat),
                                       dtype=jnp.float32)
    # EMACenter buffer is lazily initialized to zeros(1, D) in the module.
    center = jnp.zeros((1, feat), dtype=jnp.float32)

    student_temp = 0.1
    teacher_temp = 0.07
    warmup_teacher_temp = 0.04
    warmup_teacher_temp_iters = 30
    step = 5

    loss, new_center = dino_loss(
        student_logits, teacher_logits, center,
        num_local_crops=num_local_crops, step=step,
        student_temp=student_temp, teacher_temp=teacher_temp,
        warmup_teacher_temp=warmup_teacher_temp,
        warmup_teacher_temp_iters=warmup_teacher_temp_iters,
        center_momentum=0.9,
        batch_tile=8,          # force a multi-tile grid + 2-way core split in the demo
    )
    jax.block_until_ready(loss)
    jax.block_until_ready(new_center)

    # Effective teacher temp at this step (same schedule as the module).
    eff_t_temp = warmup_teacher_temp + step * (
        (teacher_temp - warmup_teacher_temp) / warmup_teacher_temp_iters)
    ref = _reference_loss(student_logits, teacher_logits, center,
                          num_local_crops=num_local_crops,
                          student_temp=student_temp,
                          teacher_temp=eff_t_temp)
    ref_center = center * 0.9 + jnp.mean(teacher_logits, axis=0,
                                         keepdims=True) * 0.1

    # Loose-ish loss tolerance because the teacher softmax uses the EUP
    # approximate reciprocal; the center path is exact f32 math.
    assert jnp.allclose(loss, ref, atol=1e-2, rtol=1e-2), (loss, ref)
    assert jnp.allclose(new_center, ref_center, atol=1e-5, rtol=1e-5)
    print("KERNEL_OK")
</pallas_src>

<mosaic_0001>
module attributes {stable_mosaic.version = 11 : i64} {
  func.func @_dino_loss_kernel(%arg0: i32, %arg1: i32, %arg2: memref<4x8x128xf32, #tpu.memory_space<vmem>>, %arg3: memref<2x8x128xf32, #tpu.memory_space<vmem>>, %arg4: memref<1x128xf32, #tpu.memory_space<vmem>>, %arg5: memref<1x1x128xf32, #tpu.memory_space<vmem>>, %arg6: memref<1x1x128xf32, #tpu.memory_space<vmem>>, %arg7: memref<1x1xf32, #tpu.memory_space<vmem>>, %arg8: memref<1x1x128xf32, #tpu.memory_space<vmem>>) attributes {dimension_semantics = [#tpu.dimension_semantics<parallel>, #tpu.dimension_semantics<arbitrary>], iteration_bounds = array<i64: 2, 2>, scalar_prefetch = 0 : i64, scratch_operands = 2 : i64, tpu.core_type = #tpu.core_type<tc>, window_params = [{transform_indices = @transform_0, window_bounds = array<i64: 4, 8, 128>}, {transform_indices = @transform_1, window_bounds = array<i64: 2, 8, 128>}, {pipeline_mode = #tpu.pipeline_mode<synchronous>, transform_indices = @transform_2, window_bounds = array<i64: 1, 128>}, {transform_indices = @transform_3, window_bounds = array<i64: 1, 1, 128>}, {transform_indices = @transform_4, window_bounds = array<i64: 1, 1, 128>}]} {
    %c0_i32 = arith.constant 0 : i32
    %0 = arith.cmpi eq, %arg1, %c0_i32 : i32
    %1 = arith.extui %0 : i1 to i32
    %c0_i32_0 = arith.constant 0 : i32
    %2 = arith.cmpi ne, %1, %c0_i32_0 : i32
    scf.if %2 {
      %cst_35 = arith.constant 0.000000e+00 : f32
      %108 = vector.broadcast %cst_35 : f32 to vector<1x1xf32>
      %c0_36 = arith.constant 0 : index
      %c0_37 = arith.constant 0 : index
      %109 = vector.load %arg7[%c0_36, %c0_37] : memref<1x1xf32, #tpu.memory_space<vmem>>, vector<1x1xf32>
      tpu.vector_store %arg7[%c0_36, %c0_37], %108 {strides = array<i32>} : memref<1x1xf32, #tpu.memory_space<vmem>>, vector<1x1xf32>,
      %cst_38 = arith.constant 0.000000e+00 : f32
      %110 = vector.broadcast %cst_38 : f32 to vector<1x1x128xf32>
      %c0_39 = arith.constant 0 : index
      %c0_40 = arith.constant 0 : index
      %c0_41 = arith.constant 0 : index
      %111 = vector.load %arg8[%c0_39, %c0_40, %c0_41] : memref<1x1x128xf32, #tpu.memory_space<vmem>>, vector<1x1x128xf32>
      tpu.vector_store %arg8[%c0_39, %c0_40, %c0_41], %110 {strides = array<i32>} : memref<1x1x128xf32, #tpu.memory_space<vmem>>, vector<1x1x128xf32>,
    } else {
    }
    %c0 = arith.constant 0 : index
    %c0_1 = arith.constant 0 : index
    %c0_2 = arith.constant 0 : index
    %3 = vector.load %arg3[%c0, %c0_1, %c0_2] : memref<2x8x128xf32, #tpu.memory_space<vmem>>, vector<2x8x128xf32>
    %c0_3 = arith.constant 0 : index
    %c0_4 = arith.constant 0 : index
    %4 = vector.load %arg4[%c0_3, %c0_4] : memref<1x128xf32, #tpu.memory_space<vmem>>, vector<1x128xf32>
    %c0_5 = arith.constant 0 : index
    %c0_6 = arith.constant 0 : index
    %c0_7 = arith.constant 0 : index
    %5 = vector.load %arg8[%c0_5, %c0_6, %c0_7] : memref<1x1x128xf32, #tpu.memory_space<vmem>>, vector<1x1x128xf32>
    %cst = arith.constant dense<0.000000e+00> : vector<8x128xf32>
    %6 = vector.multi_reduction <add>, %3, %cst [0] : vector<2x8x128xf32> to vector<8x128xf32>
    %7 = vector.shape_cast %6 : vector<8x128xf32> to vector<1x8x128xf32>
    %cst_8 = arith.constant dense<0.000000e+00> : vector<1x128xf32>
    %8 = vector.multi_reduction <add>, %7, %cst_8 [1] : vector<1x8x128xf32> to vector<1x128xf32>
    %9 = vector.shape_cast %8 : vector<1x128xf32> to vector<1x1x128xf32>
    %10 = arith.addf %5, %9 : vector<1x1x128xf32>
    %c0_9 = arith.constant 0 : index
    %c0_10 = arith.constant 0 : index
    %c0_11 = arith.constant 0 : index
    %11 = vector.load %arg8[%c0_9, %c0_10, %c0_11] : memref<1x1x128xf32, #tpu.memory_space<vmem>>, vector<1x1x128xf32>
    tpu.vector_store %arg8[%c0_9, %c0_10, %c0_11], %10 {strides = array<i32>} : memref<1x1x128xf32, #tpu.memory_space<vmem>>, vector<1x1x128xf32>,
    %12 = vector.shape_cast %4 : vector<1x128xf32> to vector<1x1x128xf32>
    %13 = vector.broadcast %12 : vector<1x1x128xf32> to vector<2x8x128xf32>
    %14 = arith.subf %3, %13 : vector<2x8x128xf32>
    %cst_12 = arith.constant 22.2222214 : f32
    %15 = vector.broadcast %cst_12 : f32 to vector<2x8x128xf32>
    %16 = arith.mulf %14, %15 : vector<2x8x128xf32>
    %cst_13 = arith.constant dense<0xFF800000> : vector<2x8xf32>
    %17 = vector.multi_reduction <maximumf>, %16, %cst_13 [2] : vector<2x8x128xf32> to vector<2x8xf32>
    %18 = vector.shape_cast %17 : vector<2x8xf32> to vector<2x8x1xf32>
    %19 = vector.broadcast %18 : vector<2x8x1xf32> to vector<2x8x128xf32>
    %20 = arith.subf %16, %19 : vector<2x8x128xf32>
    %21 = math.exp %20 : vector<2x8x128xf32>
    %cst_14 = arith.constant dense<0.000000e+00> : vector<2x8xf32>
    %22 = vector.multi_reduction <add>, %21, %cst_14 [2] : vector<2x8x128xf32> to vector<2x8xf32>
    %23 = vector.shape_cast %22 : vector<2x8xf32> to vector<2x8x1xf32>
    %24 = tpu.reciprocal %23 {approx = true} : vector<2x8x1xf32> -> vector<2x8x1xf32>
    %25 = vector.broadcast %24 : vector<2x8x1xf32> to vector<2x8x128xf32>
    %26 = arith.mulf %21, %25 : vector<2x8x128xf32>
    %c0_15 = arith.constant 0 : index
    %c0_16 = arith.constant 0 : index
    %c0_17 = arith.constant 0 : index
    %27 = vector.load %arg2[%c0_15, %c0_16, %c0_17] : memref<4x8x128xf32, #tpu.memory_space<vmem>>, vector<4x8x128xf32>
    %cst_18 = arith.constant 1.000000e+01 : f32
    %28 = vector.broadcast %cst_18 : f32 to vector<4x8x128xf32>
    %29 = arith.mulf %27, %28 : vector<4x8x128xf32>
    %30 = vector.extract_strided_slice %29 {offsets = [0, 0, 0], sizes = [1, 8, 128], strides = [1, 1, 1]} : vector<4x8x128xf32> to vector<1x8x128xf32>
    %31 = vector.shape_cast %30 : vector<1x8x128xf32> to vector<8x128xf32>
    %cst_19 = arith.constant dense<0xFF800000> : vector<8xf32>
    %32 = vector.multi_reduction <maximumf>, %31, %cst_19 [1] : vector<8x128xf32> to vector<8xf32>
    %33 = vector.shape_cast %32 : vector<8xf32> to vector<8x1xf32>
    %34 = vector.broadcast %33 : vector<8x1xf32> to vector<8x128xf32>
    %35 = arith.subf %31, %34 : vector<8x128xf32>
    %36 = math.exp %35 : vector<8x128xf32>
    %cst_20 = arith.constant dense<0.000000e+00> : vector<8xf32>
    %37 = vector.multi_reduction <add>, %36, %cst_20 [1] : vector<8x128xf32> to vector<8xf32>
    %38 = vector.shape_cast %37 : vector<8xf32> to vector<8x1xf32>
    %39 = math.log %38 : vector<8x1xf32>
    %40 = vector.broadcast %39 : vector<8x1xf32> to vector<8x128xf32>
    %41 = arith.subf %35, %40 : vector<8x128xf32>
    %42 = vector.extract_strided_slice %29 {offsets = [1, 0, 0], sizes = [1, 8, 128], strides = [1, 1, 1]} : vector<4x8x128xf32> to vector<1x8x128xf32>
    %43 = vector.shape_cast %42 : vector<1x8x128xf32> to vector<8x128xf32>
    %cst_21 = arith.constant dense<0xFF800000> : vector<8xf32>
    %44 = vector.multi_reduction <maximumf>, %43, %cst_21 [1] : vector<8x128xf32> to vector<8xf32>
    %45 = vector.shape_cast %44 : vector<8xf32> to vector<8x1xf32>
    %46 = vector.broadcast %45 : vector<8x1xf32> to vector<8x128xf32>
    %47 = arith.subf %43, %46 : vector<8x128xf32>
    %48 = math.exp %47 : vector<8x128xf32>
    %cst_22 = arith.constant dense<0.000000e+00> : vector<8xf32>
    %49 = vector.multi_reduction <add>, %48, %cst_22 [1] : vector<8x128xf32> to vector<8xf32>
    %50 = vector.shape_cast %49 : vector<8xf32> to vector<8x1xf32>
    %51 = math.log %50 : vector<8x1xf32>
    %52 = vector.broadcast %51 : vector<8x1xf32> to vector<8x128xf32>
    %53 = arith.subf %47, %52 : vector<8x128xf32>
    %54 = arith.addf %41, %53 : vector<8x128xf32>
    %55 = vector.extract_strided_slice %29 {offsets = [2, 0, 0], sizes = [1, 8, 128], strides = [1, 1, 1]} : vector<4x8x128xf32> to vector<1x8x128xf32>
    %56 = vector.shape_cast %55 : vector<1x8x128xf32> to vector<8x128xf32>
    %cst_23 = arith.constant dense<0xFF800000> : vector<8xf32>
    %57 = vector.multi_reduction <maximumf>, %56, %cst_23 [1] : vector<8x128xf32> to vector<8xf32>
    %58 = vector.shape_cast %57 : vector<8xf32> to vector<8x1xf32>
    %59 = vector.broadcast %58 : vector<8x1xf32> to vector<8x128xf32>
    %60 = arith.subf %56, %59 : vector<8x128xf32>
    %61 = math.exp %60 : vector<8x128xf32>
    %cst_24 = arith.constant dense<0.000000e+00> : vector<8xf32>
    %62 = vector.multi_reduction <add>, %61, %cst_24 [1] : vector<8x128xf32> to vector<8xf32>
    %63 = vector.shape_cast %62 : vector<8xf32> to vector<8x1xf32>
    %64 = math.log %63 : vector<8x1xf32>
    %65 = vector.broadcast %64 : vector<8x1xf32> to vector<8x128xf32>
    %66 = arith.subf %60, %65 : vector<8x128xf32>
    %67 = arith.addf %54, %66 : vector<8x128xf32>
    %68 = vector.extract_strided_slice %29 {offsets = [3, 0, 0], sizes = [1, 8, 128], strides = [1, 1, 1]} : vector<4x8x128xf32> to vector<1x8x128xf32>
    %69 = vector.shape_cast %68 : vector<1x8x128xf32> to vector<8x128xf32>
    %cst_25 = arith.constant dense<0xFF800000> : vector<8xf32>
    %70 = vector.multi_reduction <maximumf>, %69, %cst_25 [1] : vector<8x128xf32> to vector<8xf32>
    %71 = vector.shape_cast %70 : vector<8xf32> to vector<8x1xf32>
    %72 = vector.broadcast %71 : vector<8x1xf32> to vector<8x128xf32>
    %73 = arith.subf %69, %72 : vector<8x128xf32>
    %74 = math.exp %73 : vector<8x128xf32>
    %cst_26 = arith.constant dense<0.000000e+00> : vector<8xf32>
    %75 = vector.multi_reduction <add>, %74, %cst_26 [1] : vector<8x128xf32> to vector<8xf32>
    %76 = vector.shape_cast %75 : vector<8xf32> to vector<8x1xf32>
    %77 = math.log %76 : vector<8x1xf32>
    %78 = vector.broadcast %77 : vector<8x1xf32> to vector<8x128xf32>
    %79 = arith.subf %73, %78 : vector<8x128xf32>
    %80 = arith.addf %67, %79 : vector<8x128xf32>
    %cst_27 = arith.constant 0.000000e+00 : f32
    %81 = vector.broadcast %cst_27 : f32 to vector<1x1xf32>
    %82 = vector.extract_strided_slice %26 {offsets = [0, 0, 0], sizes = [1, 8, 128], strides = [1, 1, 1]} : vector<2x8x128xf32> to vector<1x8x128xf32>
    %83 = vector.shape_cast %82 : vector<1x8x128xf32> to vector<8x128xf32>
    %84 = arith.subf %41, %80 : vector<8x128xf32>
    %85 = arith.mulf %83, %84 : vector<8x128xf32>
    %86 = vector.shape_cast %85 : vector<8x128xf32> to vector<1x8x128xf32>
    %cst_28 = arith.constant dense<0.000000e+00> : vector<1xf32>
    %87 = vector.multi_reduction <add>, %86, %cst_28 [1, 2] : vector<1x8x128xf32> to vector<1xf32>
    %88 = vector.shape_cast %87 : vector<1xf32> to vector<1x1x1xf32>
    %89 = vector.extract %88[0, 0, 0] : f32 from vector<1x1x1xf32>
    %90 = vector.broadcast %89 : f32 to vector<1x1xf32>
    %91 = arith.addf %81, %90 : vector<1x1xf32>
    %92 = vector.extract_strided_slice %26 {offsets = [1, 0, 0], sizes = [1, 8, 128], strides = [1, 1, 1]} : vector<2x8x128xf32> to vector<1x8x128xf32>
    %93 = vector.shape_cast %92 : vector<1x8x128xf32> to vector<8x128xf32>
    %94 = arith.subf %53, %80 : vector<8x128xf32>
    %95 = arith.mulf %93, %94 : vector<8x128xf32>
    %96 = vector.shape_cast %95 : vector<8x128xf32> to vector<1x8x128xf32>
    %cst_29 = arith.constant dense<0.000000e+00> : vector<1xf32>
    %97 = vector.multi_reduction <add>, %96, %cst_29 [1, 2] : vector<1x8x128xf32> to vector<1xf32>
    %98 = vector.shape_cast %97 : vector<1xf32> to vector<1x1x1xf32>
    %99 = vector.extract %98[0, 0, 0] : f32 from vector<1x1x1xf32>
    %100 = vector.broadcast %99 : f32 to vector<1x1xf32>
    %101 = arith.addf %91, %100 : vector<1x1xf32>
    %c0_30 = arith.constant 0 : index
    %c0_31 = arith.constant 0 : index
    %102 = vector.load %arg7[%c0_30, %c0_31] : memref<1x1xf32, #tpu.memory_space<vmem>>, vector<1x1xf32>
    %103 = arith.addf %102, %101 : vector<1x1xf32>
    %c0_32 = arith.constant 0 : index
    %c0_33 = arith.constant 0 : index
    %104 = vector.load %arg7[%c0_32, %c0_33] : memref<1x1xf32, #tpu.memory_space<vmem>>, vector<1x1xf32>
    tpu.vector_store %arg7[%c0_32, %c0_33], %103 {strides = array<i32>} : memref<1x1xf32, #tpu.memory_space<vmem>>, vector<1x1xf32>,
    %c1_i32 = arith.constant 1 : i32
    %105 = arith.cmpi eq, %arg1, %c1_i32 : i32
    %106 = arith.extui %105 : i1 to i32
    %c0_i32_34 = arith.constant 0 : i32
    %107 = arith.cmpi ne, %106, %c0_i32_34 : i32
    scf.if %107 {
      %c0_35 = arith.constant 0 : index
      %c0_36 = arith.constant 0 : index
      %108 = vector.load %arg7[%c0_35, %c0_36] : memref<1x1xf32, #tpu.memory_space<vmem>>, vector<1x1xf32>
      %cst_37 = arith.constant 0.000000e+00 : f32
      %109 = vector.broadcast %cst_37 : f32 to vector<1x1x128xf32>
      %110 = vector.shape_cast %108 : vector<1x1xf32> to vector<1x1x1xf32>
      %111 = vector.broadcast %110 : vector<1x1x1xf32> to vector<1x1x128xf32>
      %112 = arith.addf %111, %109 : vector<1x1x128xf32>
      %c0_38 = arith.constant 0 : index
      %c0_39 = arith.constant 0 : index
      %c0_40 = arith.constant 0 : index
      %113 = vector.load %arg5[%c0_38, %c0_39, %c0_40] : memref<1x1x128xf32, #tpu.memory_space<vmem>>, vector<1x1x128xf32>
      tpu.vector_store %arg5[%c0_38, %c0_39, %c0_40], %112 {strides = array<i32>} : memref<1x1x128xf32, #tpu.memory_space<vmem>>, vector<1x1x128xf32>,
      %c0_41 = arith.constant 0 : index
      %c0_42 = arith.constant 0 : index
      %c0_43 = arith.constant 0 : index
      %114 = vector.load %arg8[%c0_41, %c0_42, %c0_43] : memref<1x1x128xf32, #tpu.memory_space<vmem>>, vector<1x1x128xf32>
      %c0_44 = arith.constant 0 : index
      %c0_45 = arith.constant 0 : index
      %c0_46 = arith.constant 0 : index
      %115 = vector.load %arg6[%c0_44, %c0_45, %c0_46] : memref<1x1x128xf32, #tpu.memory_space<vmem>>, vector<1x1x128xf32>
      tpu.vector_store %arg6[%c0_44, %c0_45, %c0_46], %114 {strides = array<i32>} : memref<1x1x128xf32, #tpu.memory_space<vmem>>, vector<1x1x128xf32>,
    } else {
    }
    return
  }
  func.func @transform_0(%arg0: i32, %arg1: i32) -> (i32, i32, i32) {
    %c2_i32 = arith.constant 2 : i32
    %0 = arith.muli %arg0, %c2_i32 : i32
    %1 = arith.addi %0, %arg1 : i32
    %c0_i32 = arith.constant 0 : i32
    %c0_i32_0 = arith.constant 0 : i32
    %c0_i32_1 = arith.constant 0 : i32
    return %c0_i32, %1, %c0_i32_0 : i32, i32, i32
  }
  func.func @transform_1(%arg0: i32, %arg1: i32) -> (i32, i32, i32) {
    %c2_i32 = arith.constant 2 : i32
    %0 = arith.muli %arg0, %c2_i32 : i32
    %1 = arith.addi %0, %arg1 : i32
    %c0_i32 = arith.constant 0 : i32
    %c0_i32_0 = arith.constant 0 : i32
    %c0_i32_1 = arith.constant 0 : i32
    return %c0_i32, %1, %c0_i32_0 : i32, i32, i32
  }
  func.func @transform_2(%arg0: i32, %arg1: i32) -> (i32, i32) {
    %c0_i32 = arith.constant 0 : i32
    %c0_i32_0 = arith.constant 0 : i32
    %c0_i32_1 = arith.constant 0 : i32
    return %c0_i32, %c0_i32_0 : i32, i32
  }
  func.func @transform_3(%arg0: i32, %arg1: i32) -> (i32, i32, i32) {
    %c0_i32 = arith.constant 0 : i32
    %c0_i32_0 = arith.constant 0 : i32
    %c0_i32_1 = arith.constant 0 : i32
    return %arg0, %c0_i32, %c0_i32_0 : i32, i32, i32
  }
  func.func @transform_4(%arg0: i32, %arg1: i32) -> (i32, i32, i32) {
    %c0_i32 = arith.constant 0 : i32
    %c0_i32_0 = arith.constant 0 : i32
    %c0_i32_1 = arith.constant 0 : i32
    return %arg0, %c0_i32, %c0_i32_0 : i32, i32, i32
  }
}

</mosaic_0001>

<llo_original>
// kernel: tpu_custom_call.1
$region0: #{tpu_custom_call.1}
  #allocation0 [shape = 'u32[]', space=smem, size = 0x4, offset = 0x4, fixed_abs, tag = 'smem constant byte address 0x4 - core index']
  #allocation1 [shape = 'u32[144,128]{1,0:T(1,128)}', space=vmem, size = 0x12000, scoped, tag = 'internal scratch']
  #allocation2 [shape = 'f32[1,1]{1,0:T(1,128)}', space=vmem, size = 0x200, scoped, tag = 'scratch operand']
  #allocation3 [shape = 'f32[1,1,128]{2,1,0:T(1,128)}', space=vmem, size = 0x200, scoped, tag = 'scratch operand']
  %s0 = inlined_call_operand.hbm [shape: f32[4,32,128], index: 0, kind: input, shape index: {}]
  %s1 = inlined_call_operand.hbm [shape: f32[2,32,128], index: 1, kind: input, shape index: {}]
  %s2 = inlined_call_operand.vmem [shape: f32[1,128], index: 2, kind: input, shape index: {}]
  %s3 = inlined_call_operand.hbm [shape: f32[2,1,128], index: 3, kind: output, shape index: {0}]
  %s4 = inlined_call_operand.hbm [shape: f32[2,1,128], index: 4, kind: output, shape index: {1}]
  %5 = xla_tuple %s3, %s4
  %s6 = sld [smem:[#allocation0]]
  $region69: #{tpu_custom_call.1} parent=0
    _
  %s8 = ssub.s32 1, %s6
  %s9 = scalar_select 0, %s8, %s6
  $region1: #{tpu_custom_call.1} parent=0
    #allocation4 [shape = 'u8[32768]{0}', space=vmem, size = 0x8000, scoped, tag = 'input window, operand 0']
    #allocation5 [shape = 's32[2]{0}', space=sflag, size = 0x8, scoped, tag = 'scoped memory for tpu_custom_call.1']
    #allocation6 [shape = 's32[2]{0}', space=sflag, size = 0x8, scoped, tag = 'scoped memory for tpu_custom_call.1']
    #allocation7 [shape = 'u8[16384]{0}', space=vmem, size = 0x4000, scoped, tag = 'input window, operand 1']
    #allocation8 [shape = 's32[2]{0}', space=sflag, size = 0x8, scoped, tag = 'scoped memory for tpu_custom_call.1']
    #allocation9 [shape = 'u8[1024]{0}', space=vmem, size = 0x400, scoped, tag = 'output window, operand 0']
    #allocation10 [shape = 'u8[1024]{0}', space=vmem, size = 0x400, scoped, tag = 'output window, operand 1']
    #allocation11 [shape = 's32[2]{0}', space=sflag, size = 0x8, scoped, tag = 'scoped memory for tpu_custom_call.1']
    %10 = vsyncpa [#allocation5], 0
    %s11 = scalar_lea.sflag [#allocation5], 1
    %12 = vsyncpa %s11, 0
    %13 = vsyncpa [#allocation8], 0
    %s14 = scalar_lea.sflag [#allocation8], 1
    %15 = vsyncpa %s14, 0
    %16 = vsyncpa [#allocation6], 0
    %s17 = scalar_lea.sflag [#allocation6], 1
    %18 = vsyncpa %s17, 0
    %19 = vsyncpa [#allocation11], 0
    %s20 = scalar_lea.sflag [#allocation11], 1
    %21 = vsyncpa %s20, 0
    loop: start=0, step=1, limit=6
    $region2: #{tpu_custom_call.1} parent=1 // loop_pre_header
      _
    $region3: #{tpu_custom_call.1} parent=1 // loop_header
      %s23 = sphi 0, %s27
      %p24 = scmp.ge.s32.totalorder %s23, 6
      %s30 = sphi 0, %s42
      %s31 = sphi 0, %s38
      %s32 = sphi 0, %s30
      %s33 = sphi 0, %s31
      %s34 = sphi 0, %s32
      %s35 = sphi 0, %s33
      %s49 = sphi 0, %s51
      %s52 = sphi 0, %s49
      %s53 = sphi 0, %s52
      %s69 = sphi 0, %s53
      %s79 = sphi 0, %s81
      %s82 = sphi 0, %s79
      %s83 = sphi 0, %s82
      %s99 = sphi 0, %s83
      %s103 = sphi 0, %s103
      %s105 = sphi 0, %s103
      %s106 = sphi 0, %s105
      %s120 = sphi 0, %s106
      %s126 = sphi 0, %s128
      %s129 = sphi 0, %s126
      %s130 = sphi 0, %s129
      %s146 = sphi 0, %s130
      %s152 = sphi 0, %s154
      %s155 = sphi 0, %s152
      %s156 = sphi 0, %s155
      %s172 = sphi 0, %s156
    $region4: #{tpu_custom_call.1} parent=1 // loop_header_branch
      %26 = sbr.rel (%p24) target = $region8
    $region5: #{tpu_custom_call.1} parent=1 // loop_body
      %s28 = ssub.s32 %s23, 1
      %s29 = ssub.s32 %s23, 2
      %s36 = sadd.s32 1, %s31
      %p37 = scmp.ge.s32.totalorder %s36, 2
      %s38 = scalar_select %p37, 0, %s36
      %s39 = sadd.s32 1, %s30
      %s40 = scalar_select %p37, %s39, %s30
      %p41 = scmp.ge.s32.totalorder %s40, 2
      %s42 = scalar_select %p41, 0, %s40
      %s43 = smul.u32 %s30, 2
      %s44 = sadd.s32 %s43, %s31
      %s45 = smul.u32 %s42, 2
      %s46 = sadd.s32 %s45, %s38
      %s47 = ssub.s32 %s44, %s46
      %p48 = scmp.eq.s32.totalorder %s47, 0
      %s50 = sadd.s32 %s49, 1
      %s51 = scalar_select %p48, %s49, %s50
      %p54 = pneg %p48
      %p55 = scmp.eq.s32.totalorder %s23, 3
      %p56 = por %p54, %p55
      %p57 = scmp.ne.s32.totalorder %s49, %s52
      %p58 = scmp.eq.s32.totalorder %s23, 0
      %p59 = por %p57, %p58
      %p60 = scmp.ne.s32.totalorder %s49, %s52
      %p61 = scmp.eq.s32.totalorder %s28, 3
      %p62 = por %p60, %p61
      %p63 = scmp.ne.s32.totalorder %s52, %s53
      %p64 = scmp.eq.s32.totalorder %s28, 0
      %p65 = por %p63, %p64
      %p66 = scmp.ne.s32.totalorder %s52, %s53
      %p67 = scmp.eq.s32.totalorder %s29, 3
      %p68 = por %p66, %p67
      %p70 = scmp.ne.s32.totalorder %s53, %s69
      %p71 = scmp.eq.s32.totalorder %s29, 0
      %p72 = por %p70, %p71
      %s73 = smul.u32 %s30, 2
      %s74 = sadd.s32 %s73, %s31
      %s75 = smul.u32 %s42, 2
      %s76 = sadd.s32 %s75, %s38
      %s77 = ssub.s32 %s74, %s76
      %p78 = scmp.eq.s32.totalorder %s77, 0
      %s80 = sadd.s32 %s79, 1
      %s81 = scalar_select %p78, %s79, %s80
      %p84 = pneg %p78
      %p85 = scmp.eq.s32.totalorder %s23, 3
      %p86 = por %p84, %p85
      %p87 = scmp.ne.s32.totalorder %s79, %s82
      %p88 = scmp.eq.s32.totalorder %s23, 0
      %p89 = por %p87, %p88
      %p90 = scmp.ne.s32.totalorder %s79, %s82
      %p91 = scmp.eq.s32.totalorder %s28, 3
      %p92 = por %p90, %p91
      %p93 = scmp.ne.s32.totalorder %s82, %s83
      %p94 = scmp.eq.s32.totalorder %s28, 0
      %p95 = por %p93, %p94
      %p96 = scmp.ne.s32.totalorder %s82, %s83
      %p97 = scmp.eq.s32.totalorder %s29, 3
      %p98 = por %p96, %p97
      %p100 = scmp.ne.s32.totalorder %s83, %s99
      %p101 = scmp.eq.s32.totalorder %s29, 0
      %p102 = por %p100, %p101
      %s104 = sadd.s32 %s103, 1
      %p107 = scmp.eq.s32.totalorder %s23, 3
      %p108 = scmp.ne.s32.totalorder %s103, %s105
      %p109 = scmp.eq.s32.totalorder %s23, 0
      %p110 = por %p108, %p109
      %p111 = scmp.ne.s32.totalorder %s103, %s105
      %p112 = scmp.eq.s32.totalorder %s28, 3
      %p113 = por %p111, %p112
      %p114 = scmp.ne.s32.totalorder %s105, %s106
      %p115 = scmp.eq.s32.totalorder %s28, 0
      %p116 = por %p114, %p115
      %p117 = scmp.ne.s32.totalorder %s105, %s106
      %p118 = scmp.eq.s32.totalorder %s29, 3
      %p119 = por %p117, %p118
      %p121 = scmp.ne.s32.totalorder %s106, %s120
      %p122 = scmp.eq.s32.totalorder %s29, 0
      %p123 = por %p121, %p122
      %s124 = ssub.s32 %s30, %s42
      %p125 = scmp.eq.s32.totalorder %s124, 0
      %s127 = sadd.s32 %s126, 1
      %s128 = scalar_select %p125, %s126, %s127
      %p131 = pneg %p125
      %p132 = scmp.eq.s32.totalorder %s23, 3
      %p133 = por %p131, %p132
      %p134 = scmp.ne.s32.totalorder %s126, %s129
      %p135 = scmp.eq.s32.totalorder %s23, 0
      %p136 = por %p134, %p135
      %p137 = scmp.ne.s32.totalorder %s126, %s129
      %p138 = scmp.eq.s32.totalorder %s28, 3
      %p139 = por %p137, %p138
      %p140 = scmp.ne.s32.totalorder %s129, %s130
      %p141 = scmp.eq.s32.totalorder %s28, 0
      %p142 = por %p140, %p141
      %p143 = scmp.ne.s32.totalorder %s129, %s130
      %p144 = scmp.eq.s32.totalorder %s29, 3
      %p145 = por %p143, %p144
      %p147 = scmp.ne.s32.totalorder %s130, %s146
      %p148 = scmp.eq.s32.totalorder %s29, 0
      %p149 = por %p147, %p148
      %s150 = ssub.s32 %s30, %s42
      %p151 = scmp.eq.s32.totalorder %s150, 0
      %s153 = sadd.s32 %s152, 1
      %s154 = scalar_select %p151, %s152, %s153
      %p157 = pneg %p151
      %p158 = scmp.eq.s32.totalorder %s23, 3
      %p159 = por %p157, %p158
      %p160 = scmp.ne.s32.totalorder %s152, %s155
      %p161 = scmp.eq.s32.totalorder %s23, 0
      %p162 = por %p160, %p161
      %p163 = scmp.ne.s32.totalorder %s152, %s155
      %p164 = scmp.eq.s32.totalorder %s28, 3
      %p165 = por %p163, %p164
      %p166 = scmp.ne.s32.totalorder %s155, %s156
      %p167 = scmp.eq.s32.totalorder %s28, 0
      %p168 = por %p166, %p167
      %p169 = scmp.ne.s32.totalorder %s155, %s156
      %p170 = scmp.eq.s32.totalorder %s29, 3
      %p171 = por %p169, %p170
      %p173 = scmp.ne.s32.totalorder %s156, %s172
      %p174 = scmp.eq.s32.totalorder %s29, 0
      %p175 = por %p173, %p174
      %p176 = scmp.le.s32.totalorder 1, %s23
      %p177 = scmp.lt.s32.totalorder %s23, 5
      %p178 = pnand %p176, %p177
      %p179 = pneg %p178
      // Predicated region
      $region9: #{tpu_custom_call.1} parent=5 // pred_check
        _
      $region10: #{tpu_custom_call.1} parent=5 // pred_check_branch
        %181 = sbr.rel (%p178) target = $region12
      $region11: #{tpu_custom_call.1} parent=5 // pred_region
        %s182 = ssub.s32 %s23, 1
        // Predicated region
        $region13: #{tpu_custom_call.1} parent=11 // pred_check
          %p183 = pneg %p116
        $region14: #{tpu_custom_call.1} parent=11 // pred_check_branch
          %185 = sbr.rel (%p183) target = $region16
        $region15: #{tpu_custom_call.1} parent=11 // pred_region
          _
        $region16: #{tpu_custom_call.1} parent=11 // pred_fallthru
          _
      $region12: #{tpu_custom_call.1} parent=5 // pred_fallthru
        _
      %p186 = scmp.lt.s32.totalorder %s23, 4
      // Predicated region
      $region17: #{tpu_custom_call.1} parent=5 // pred_check
        %p187 = pneg %p186
      $region18: #{tpu_custom_call.1} parent=5 // pred_check_branch
        %189 = sbr.rel (%p187) target = $region20
      $region19: #{tpu_custom_call.1} parent=5 // pred_region
        // Predicated region
        $region21: #{tpu_custom_call.1} parent=19 // pred_check
          %p190 = pneg %p59
        $region22: #{tpu_custom_call.1} parent=19 // pred_check_branch
          %192 = sbr.rel (%p190) target = $region24
        $region23: #{tpu_custom_call.1} parent=19 // pred_region
          %s193 = sand.u32 %s49, 1
          %s194 = scalar_lea.sflag [#allocation5], %s193
          %s195 = sand.u32 %s49, 1
          %s196 = smul.addr %s195, 32
          %s197 = scalar_lea.vmem [#allocation4], %s196
          %s198 = smul.u32 %s30, 2
          %s199 = sadd.s32 %s198, %s31
          %s201 = ssub.s32 512, 512
          %202 = vsyncadd %s194, %s201
          %s203 = smul.addr %s199, 128
          %s204 = scalar_lea.hbm %s0, %s203
          %s205 = sshll.u32 %s197, 4
          %s206 = int_to_ptr.vmem [resolvable:$true] %s205
          %211 = dma.hbm_to_vmem [thread:$0]  %s204, 512, %s206, %s194, 512, 128, 8
        $region24: #{tpu_custom_call.1} parent=19 // pred_fallthru
          _
        // Predicated region
        $region25: #{tpu_custom_call.1} parent=19 // pred_check
          %p212 = pneg %p89
        $region26: #{tpu_custom_call.1} parent=19 // pred_check_branch
          %214 = sbr.rel (%p212) target = $region28
        $region27: #{tpu_custom_call.1} parent=19 // pred_region
          %s215 = sand.u32 %s79, 1
          %s216 = scalar_lea.sflag [#allocation8], %s215
          %s217 = sand.u32 %s79, 1
          %s218 = smul.addr %s217, 16
          %s219 = scalar_lea.vmem [#allocation7], %s218
          %s220 = smul.u32 %s30, 2
          %s221 = sadd.s32 %s220, %s31
          %s223 = ssub.s32 256, 256
          %224 = vsyncadd %s216, %s223
          %s225 = smul.addr %s221, 128
          %s226 = scalar_lea.hbm %s1, %s225
          %s227 = sshll.u32 %s219, 4
          %s228 = int_to_ptr.vmem [resolvable:$true] %s227
          %233 = dma.hbm_to_vmem [thread:$0]  %s226, 256, %s228, %s216, 512, 128, 8
        $region28: #{tpu_custom_call.1} parent=19 // pred_fallthru
          _
      $region20: #{tpu_custom_call.1} parent=5 // pred_fallthru
        _
      %p234 = scmp.le.s32.totalorder 1, %s23
      %p235 = scmp.lt.s32.totalorder %s23, 5
      %p236 = pnand %p234, %p235
      %p237 = pneg %p236
      // Predicated region
      $region29: #{tpu_custom_call.1} parent=5 // pred_check
        _
      $region30: #{tpu_custom_call.1} parent=5 // pred_check_branch
        %239 = sbr.rel (%p236) target = $region32
      $region31: #{tpu_custom_call.1} parent=5 // pred_region
        %s240 = ssub.s32 %s23, 1
        %s241 = sand.u32 %s52, 1
        %s242 = scalar_lea.sflag [#allocation5], %s241
        %s243 = sand.u32 %s52, 1
        %s244 = smul.addr %s243, 32
        %s245 = scalar_lea.vmem [#allocation4], %s244
        // Predicated region
        $region33: #{tpu_custom_call.1} parent=31 // pred_check
          %p246 = pneg %p65
        $region34: #{tpu_custom_call.1} parent=31 // pred_check_branch
          %248 = sbr.rel (%p246) target = $region36
        $region35: #{tpu_custom_call.1} parent=31 // pred_region
          %249 = dma.done %s242, 512
        $region36: #{tpu_custom_call.1} parent=31 // pred_fallthru
          _
        %s250 = sand.u32 %s82, 1
        %s251 = scalar_lea.sflag [#allocation8], %s250
        %s252 = sand.u32 %s82, 1
        %s253 = smul.addr %s252, 16
        %s254 = scalar_lea.vmem [#allocation7], %s253
        // Predicated region
        $region37: #{tpu_custom_call.1} parent=31 // pred_check
          %p255 = pneg %p95
        $region38: #{tpu_custom_call.1} parent=31 // pred_check_branch
          %257 = sbr.rel (%p255) target = $region40
        $region39: #{tpu_custom_call.1} parent=31 // pred_region
          %258 = dma.done %s251, 256
        $region40: #{tpu_custom_call.1} parent=31 // pred_fallthru
          _
        %s259 = sand.u32 %s52, 1
        %s260 = scalar_lea.sflag [#allocation5], %s259
        %s261 = sand.u32 %s52, 1
        %s262 = smul.addr %s261, 32
        %s263 = scalar_lea.vmem [#allocation4], %s262
        %p264 = pneg %p65
        %p265 = pneg %p62
        %s266 = sand.u32 %s82, 1
        %s267 = scalar_lea.sflag [#allocation8], %s266
        %s268 = sand.u32 %s82, 1
        %s269 = smul.addr %s268, 16
        %s270 = scalar_lea.vmem [#allocation7], %s269
        %p271 = pneg %p95
        %p272 = pneg %p92
        %p273 = pneg %p116
        %p274 = pneg %p113
        %p275 = pneg %p142
        %p276 = pneg %p139
        %s277 = sand.u32 %s129, 1
        %s278 = scalar_lea.sflag [#allocation6], %s277
        %s279 = sand.u32 %s129, 1
        %s280 = scalar_lea.vmem [#allocation9], %s279
        %p281 = pneg %p168
        %p282 = pneg %p165
        %s283 = sand.u32 %s155, 1
        %s284 = scalar_lea.sflag [#allocation11], %s283
        %s285 = sand.u32 %s155, 1
        %s286 = scalar_lea.vmem [#allocation10], %s285
        %s287 = smul.u32 %s32, 2
        %s288 = sadd.s32 %s287, %s33
        %s289 = smul.u32 %s32, 2
        %s290 = sadd.s32 %s289, %s33
        %p291 = scmp.eq.s32.totalorder %s33, 0
        // Predicated region
        $region41: #{tpu_custom_call.1} parent=31 // pred_check
          %p292 = pneg %p291
        $region42: #{tpu_custom_call.1} parent=31 // pred_check_branch
          %294 = sbr.rel (%p292) target = $region44
        $region43: #{tpu_custom_call.1} parent=31 // pred_region
          %vm295 = vcmask 0
          %296 = vst.msk [vmem:[#allocation2] sm:$0x1] %vm295, 0.0
          %297 = vst [vmem:[#allocation3] sm:$0x1] 0.0
        $region44: #{tpu_custom_call.1} parent=31 // pred_fallthru
          _
        %v298 = vld [vmem:[%s254] sm:$0xff]
        %v299 = vld [vmem:[%s254 + $0x8] sm:$0xff]
        %v300 = vld [vmem:[%s2] sm:$0x1]
        %v301 = vld [vmem:[#allocation3] sm:$0x1]
        %v302 = vadd.f32 %v298, %v299
        %v303 = vrot.slane %v302, 4
        %v304 = vadd.f32 %v302, %v303
        %v305 = vrot.slane %v304, 2
        %v306 = vadd.f32 %v304, %v305
        %v307 = vrot.slane %v306, 1
        %v308 = vadd.f32 %v306, %v307
        %v309 = vadd.f32 %v301, %v308
        %310 = vst [vmem:[#allocation3] sm:$0x1] %v309
        %v312 = vlaneseq
        %v313 = vshrl.u32 %v312, 7
        %v314 = vsub.s32 0, %v313
        %v315 = vrot.slane %v300, %v314
        %v317 = vsub.f32 %v298, %v315
        %v318 = vsub.f32 %v299, %v315
        %v319 = vmul.f32 %v317, 22.222221
        %v320 = vmul.f32 %v318, 22.222221
        %321 = vmax.xlane.f32.xlu0 %v319
        %v322 = vpop.xlane.xlu0 %321
        %323 = vmax.xlane.f32.xlu0 %v320
        %v324 = vpop.xlane.xlu0 %323
        %v325 = vsub.f32 %v319, %v322
        %v326 = vsub.f32 %v320, %v324
        %v327 = vmul.f32 %v325, 1.442695
        %v328 = vpow.pop %v327
        %v329 = vmul.f32 %v326, 1.442695
        %v330 = vpow.pop %v329
        %331 = vadd.xlane.f32.xlu0 %v328
        %v332 = vpop.xlane.xlu0 %331
        %333 = vadd.xlane.f32.xlu0 %v330
        %v334 = vpop.xlane.xlu0 %333
        %v335 = vrcp.pop %v332
        %v336 = vrcp.pop %v334
        %v337 = vmul.f32 %v328, %v335
        %v338 = vmul.f32 %v330, %v336
        %v339 = vld [vmem:[%s245] sm:$0xff]
        %v340 = vld [vmem:[%s245 + $0x8] sm:$0xff]
        %v341 = vld [vmem:[%s245 + $0x10] sm:$0xff]
        %v342 = vld [vmem:[%s245 + $0x18] sm:$0xff]
        %v343 = vmul.f32 %v339, 10.0
        %v344 = vmul.f32 %v340, 10.0
        %v345 = vmul.f32 %v341, 10.0
        %v346 = vmul.f32 %v342, 10.0
        %347 = vmax.xlane.f32.xlu0 %v343
        %v348 = vpop.xlane.xlu0 %347
        %v349 = vsub.f32 %v343, %v348
        %v350 = vmul.f32 %v349, 1.442695
        %v351 = vpow.pop %v350
        %352 = vadd.xlane.f32.xlu0 %v351
        %v353 = vpop.xlane.xlu0 %352
        %v354 = vlog2.pop %v353
        %v355 = vmul.f32 %v354, 0.6931472
        %v356 = vsub.f32 %v349, %v355
        %357 = vmax.xlane.f32.xlu0 %v344
        %v358 = vpop.xlane.xlu0 %357
        %v359 = vsub.f32 %v344, %v358
        %v360 = vmul.f32 %v359, 1.442695
        %v361 = vpow.pop %v360
        %362 = vadd.xlane.f32.xlu0 %v361
        %v363 = vpop.xlane.xlu0 %362
        %v364 = vlog2.pop %v363
        %v365 = vmul.f32 %v364, 0.6931472
        %v366 = vsub.f32 %v359, %v365
        %v367 = vadd.f32 %v356, %v366
        %368 = vmax.xlane.f32.xlu0 %v345
        %v369 = vpop.xlane.xlu0 %368
        %v370 = vsub.f32 %v345, %v369
        %v371 = vmul.f32 %v370, 1.442695
        %v372 = vpow.pop %v371
        %373 = vadd.xlane.f32.xlu0 %v372
        %v374 = vpop.xlane.xlu0 %373
        %v375 = vlog2.pop %v374
        %v376 = vmul.f32 %v375, 0.6931472
        %v377 = vsub.f32 %v370, %v376
        %v378 = vadd.f32 %v367, %v377
        %379 = vmax.xlane.f32.xlu0 %v346
        %v380 = vpop.xlane.xlu0 %379
        %v381 = vsub.f32 %v346, %v380
        %v382 = vmul.f32 %v381, 1.442695
        %v383 = vpow.pop %v382
        %384 = vadd.xlane.f32.xlu0 %v383
        %v385 = vpop.xlane.xlu0 %384
        %v386 = vlog2.pop %v385
        %v387 = vmul.f32 %v386, 0.6931472
        %v388 = vsub.f32 %v381, %v387
        %v389 = vadd.f32 %v378, %v388
        %v390 = vsub.f32 %v356, %v389
        %v391 = vmul.f32 %v337, %v390
        %392 = vadd.xlane.f32.xlu0 %v391
        %v393 = vpop.xlane.xlu0 %392
        %v394 = vrot.slane %v393, 4
        %v395 = vadd.f32 %v393, %v394
        %v396 = vrot.slane %v395, 2
        %v397 = vadd.f32 %v395, %v396
        %v398 = vrot.slane %v397, 1
        %v399 = vadd.f32 %v397, %v398
        %s400 = vtos %v399
        %v401 = vstv %s400
        %v402 = vadd.f32 %v401, 0.0
        %v403 = vsub.f32 %v366, %v389
        %v404 = vmul.f32 %v338, %v403
        %405 = vadd.xlane.f32.xlu0 %v404
        %v406 = vpop.xlane.xlu0 %405
        %v407 = vrot.slane %v406, 4
        %v408 = vadd.f32 %v406, %v407
        %v409 = vrot.slane %v408, 2
        %v410 = vadd.f32 %v408, %v409
        %v411 = vrot.slane %v410, 1
        %v412 = vadd.f32 %v410, %v411
        %s413 = vtos %v412
        %v414 = vstv %s413
        %v415 = vadd.f32 %v402, %v414
        %v416 = vld [vmem:[#allocation2] sm:$0x1]
        %v417 = vadd.f32 %v416, %v415
        %vm418 = vcmask 0
        %419 = vst.msk [vmem:[#allocation2] sm:$0x1] %vm418, %v417
        %p420 = scmp.eq.s32.totalorder %s33, 1
        // Predicated region
        $region45: #{tpu_custom_call.1} parent=31 // pred_check
          %p421 = pneg %p420
        $region46: #{tpu_custom_call.1} parent=31 // pred_check_branch
          %423 = sbr.rel (%p421) target = $region48
        $region47: #{tpu_custom_call.1} parent=31 // pred_region
          %v424 = vld [vmem:[#allocation2] sm:$0x1]
          %426 = vset.pattern.permute.xlu0 0
          %427 = vperm.xlu0 %426, %v424
          %v428 = vpop.permute.xlu0 %427
          %v430 = vlaneseq
          %v431 = vshrl.u32 %v430, 7
          %v432 = vsub.s32 0, %v431
          %v433 = vrot.slane %v428, %v432
          %v434 = vadd.f32 %v433, 0.0
          %435 = vst [vmem:[%s280] sm:$0x1] %v434
          %v436 = vld [vmem:[#allocation3] sm:$0x1]
          %437 = vst [vmem:[%s286] sm:$0x1] %v436
        $region48: #{tpu_custom_call.1} parent=31 // pred_fallthru
          _
        %s438 = sand.u32 %s129, 1
        %s439 = scalar_lea.sflag [#allocation6], %s438
        %s440 = sand.u32 %s129, 1
        %s441 = scalar_lea.vmem [#allocation9], %s440
        %s442 = sand.u32 %s155, 1
        %s443 = scalar_lea.sflag [#allocation11], %s442
        %s444 = sand.u32 %s155, 1
        %s445 = scalar_lea.vmem [#allocation10], %s444
        // Predicated region
        $region49: #{tpu_custom_call.1} parent=31 // pred_check
          %p446 = pneg %p139
        $region50: #{tpu_custom_call.1} parent=31 // pred_check_branch
          %448 = sbr.rel (%p446) target = $region52
        $region51: #{tpu_custom_call.1} parent=31 // pred_region
          %s450 = ssub.s32 16, 16
          %451 = vsyncadd %s439, %s450
          %s452 = smul.addr %s32, 16
          %s453 = scalar_lea.hbm %s3, %s452
          %s455 = sshll.u32 %s441, 4
          %s456 = int_to_ptr.vmem [resolvable:$true] %s455
          %458 = dma.vmem_to_hbm [thread:$0]  %s456, 16, %s453, %s439
        $region52: #{tpu_custom_call.1} parent=31 // pred_fallthru
          _
        // Predicated region
        $region53: #{tpu_custom_call.1} parent=31 // pred_check
          %p459 = pneg %p165
        $region54: #{tpu_custom_call.1} parent=31 // pred_check_branch
          %461 = sbr.rel (%p459) target = $region56
        $region55: #{tpu_custom_call.1} parent=31 // pred_region
          %s463 = ssub.s32 16, 16
          %464 = vsyncadd %s443, %s463
          %s465 = smul.addr %s32, 16
          %s466 = scalar_lea.hbm %s4, %s465
          %s468 = sshll.u32 %s445, 4
          %s469 = int_to_ptr.vmem [resolvable:$true] %s468
          %471 = dma.vmem_to_hbm [thread:$0]  %s469, 16, %s466, %s443
        $region56: #{tpu_custom_call.1} parent=31 // pred_fallthru
          _
      $region32: #{tpu_custom_call.1} parent=5 // pred_fallthru
        _
      %p472 = scmp.le.s32.totalorder 2, %s23
      // Predicated region
      $region57: #{tpu_custom_call.1} parent=5 // pred_check
        %p473 = pneg %p472
      $region58: #{tpu_custom_call.1} parent=5 // pred_check_branch
        %475 = sbr.rel (%p473) target = $region60
      $region59: #{tpu_custom_call.1} parent=5 // pred_region
        %s476 = ssub.s32 %s23, 2
        // Predicated region
        $region61: #{tpu_custom_call.1} parent=59 // pred_check
          %p477 = pneg %p145
        $region62: #{tpu_custom_call.1} parent=59 // pred_check_branch
          %479 = sbr.rel (%p477) target = $region64
        $region63: #{tpu_custom_call.1} parent=59 // pred_region
          %s480 = sand.u32 %s130, 1
          %s481 = scalar_lea.sflag [#allocation6], %s480
          %s482 = sand.u32 %s130, 1
          %s483 = scalar_lea.vmem [#allocation9], %s482
          %484 = dma.done %s481, 16
        $region64: #{tpu_custom_call.1} parent=59 // pred_fallthru
          _
        // Predicated region
        $region65: #{tpu_custom_call.1} parent=59 // pred_check
          %p485 = pneg %p171
        $region66: #{tpu_custom_call.1} parent=59 // pred_check_branch
          %487 = sbr.rel (%p485) target = $region68
        $region67: #{tpu_custom_call.1} parent=59 // pred_region
          %s488 = sand.u32 %s156, 1
          %s489 = scalar_lea.sflag [#allocation11], %s488
          %s490 = sand.u32 %s156, 1
          %s491 = scalar_lea.vmem [#allocation10], %s490
          %492 = dma.done %s489, 16
        $region68: #{tpu_custom_call.1} parent=59 // pred_fallthru
          _
      $region60: #{tpu_custom_call.1} parent=5 // pred_fallthru
        _
    $region6: #{tpu_custom_call.1} parent=1 // loop_footer
      %s27 = sadd.s32 1, %s23
    $region7: #{tpu_custom_call.1} parent=1 // loop_footer_branch
      %22 = sbr.rel target = $region3
    $region8: #{tpu_custom_call.1} parent=1 // loop_exit
      _
    %493 = vsyncpa [#allocation5], 1
    %s494 = scalar_lea.sflag [#allocation5], 1
    %495 = vsyncpa %s494, 1
    %496 = vsyncpa [#allocation8], 1
    %s497 = scalar_lea.sflag [#allocation8], 1
    %498 = vsyncpa %s497, 1
    %499 = vsyncpa [#allocation6], 1
    %s500 = scalar_lea.sflag [#allocation6], 1
    %501 = vsyncpa %s500, 1
    %502 = vsyncpa [#allocation11], 1
    %s503 = scalar_lea.sflag [#allocation11], 1
    %504 = vsyncpa %s503, 1

</llo_original>
